<compile_context>
chip_gen: v7x
topology: tpu7x:2x2x1
jax: 0.10.0
libtpu: 0.0.40
codegen_flags: <defaults>
</compile_context>

<pallas_src>
import jax
import jax.numpy as jnp
from jax.experimental import pallas as pl
from jax.experimental.pallas import tpu as pltpu

_LANES = 128
_TARGET_BLOCK_BYTES = 4 << 20   # ~4 MiB per buffer: past the pipelining knee
_VMEM_LIMIT_BYTES = 32 << 20    # > v5e 16 MiB scoped default, <= v7x headroom


def _round_up(v, m):
    return ((v + m - 1) // m) * m


def _round_down(v, m):
    return (v // m) * m


def _adaptive_act_kernel(p_ref, x_ref, o_ref):
    # p_ref: (3,) float32 scalar-prefetch ref in SMEM.
    a = p_ref[0]
    b = p_ref[1]
    c_half = 0.5 * p_ref[2]
    # Upcast once in-register, compute in f32, downcast on store -> HBM
    # traffic stays at the I/O dtype width.
    x = x_ref[...].astype(jnp.float32)
    relu = jnp.maximum(x, 0.0)
    t = jnp.tanh(x)
    # sigmoid(x) == 0.5 + 0.5 * tanh(0.5 * x): one native EUP op instead of
    # logistic's exp + reciprocal (+select) lowering.
    t_half = jnp.tanh(0.5 * x)
    o_ref[...] = (a * relu + b * t + c_half * t_half + c_half).astype(o_ref.dtype)


def _reference_f32(x, p):
    """Plain-JAX reference (also used for the <128-element ragged tail)."""
    xf = x.astype(jnp.float32)
    return (p[0] * jnp.maximum(xf, 0.0)
            + p[1] * jnp.tanh(xf)
            + p[2] * jax.nn.sigmoid(xf))


def _run_streamer(x2d, p32):
    """Stream a lane-dense (rows, 128) slab through the elementwise kernel."""
    rows, _ = x2d.shape
    itemsize = jnp.dtype(x2d.dtype).itemsize
    # Sublane packing of the I/O dtype: 8 (f32), 16 (bf16), 32 (int8/fp8).
    packing = max(8, 32 // itemsize)

    if rows <= packing:
        # Tiny input: one full-extent block (allowed regardless of packing).
        block_rows = rows
    else:
        # ~4 MiB per buffer, rounded down to the packing multiple; clamp so
        # the block never exceeds the array.
        target_rows = max(
            packing,
            _round_down(_TARGET_BLOCK_BYTES // (_LANES * itemsize), packing))
        block_rows = min(target_rows, _round_down(rows, packing))

    grid = (pl.cdiv(rows, block_rows),)

    grid_spec = pltpu.PrefetchScalarGridSpec(
        num_scalar_prefetch=1,  # params -> SMEM, visible as p_ref
        grid=grid,
        in_specs=[pl.BlockSpec((block_rows, _LANES), lambda i, p: (i, 0))],
        out_specs=pl.BlockSpec((block_rows, _LANES), lambda i, p: (i, 0)),
    )

    return pl.pallas_call(
        _adaptive_act_kernel,
        out_shape=jax.ShapeDtypeStruct((rows, _LANES), x2d.dtype),
        grid_spec=grid_spec,
        compiler_params=pltpu.CompilerParams(
            dimension_semantics=("parallel",),
            vmem_limit_bytes=_VMEM_LIMIT_BYTES),
    )(p32, x2d)


def adaptive_activation(x, params):
    """params[0]*relu(x) + params[1]*tanh(x) + params[2]*sigmoid(x).

    x: any-shaped float array (e.g. NCHW feature map). params: (3,) floats.
    Output has the same shape and dtype as x.
    """
    orig_shape = x.shape
    n = x.size
    p32 = params.astype(jnp.float32)
    flat = x.reshape(-1)

    n_main = (n // _LANES) * _LANES
    if n_main == 0:
        # Entire input is smaller than one lane row: plain JAX.
        return _reference_f32(flat, p32).astype(x.dtype).reshape(orig_shape)

    rows = n_main // _LANES

    if n_main == n:
        # 128-aligned size (the common conv case): free reshape, no pad/slice.
        out2d = _run_streamer(flat.reshape(rows, _LANES), p32)
        return out2d.reshape(orig_shape)

    # Ragged tail: stream the aligned prefix through the kernel and finish the
    # <128-element tail in plain JAX (no full-array pad + slice round trips).
    out_main = _run_streamer(flat[:n_main].reshape(rows, _LANES), p32).reshape(-1)
    out_tail = _reference_f32(flat[n_main:], p32).astype(x.dtype)
    return jnp.concatenate([out_main, out_tail]).reshape(orig_shape)


if __name__ == "__main__":
    key = jax.random.PRNGKey(0)
    k1, k2 = jax.random.split(key)

    # Deterministic parameter init: nn.Parameter(torch.ones(3))
    params = jnp.ones((3,), dtype=jnp.float32)

    # NCHW input, matching typical conv feature maps (128-aligned size).
    x = jax.random.normal(k1, (2, 4, 16, 16), dtype=jnp.float32)
    out = jax.block_until_ready(adaptive_activation(x, params))
    ref = (params[0] * jnp.maximum(x, 0.0)
           + params[1] * jnp.tanh(x)
           + params[2] * jax.nn.sigmoid(x))
    assert out.shape == x.shape
    assert out.dtype == x.dtype
    assert jnp.allclose(out, ref, atol=1e-5, rtol=1e-5)

    # Ragged-size feature map (7x7), exercises the prefix + JAX-tail path.
    x2 = jax.random.normal(k2, (2, 3, 7, 7), dtype=jnp.float32)
    out2 = jax.block_until_ready(adaptive_activation(x2, params))
    ref2 = (params[0] * jnp.maximum(x2, 0.0)
            + params[1] * jnp.tanh(x2)
            + params[2] * jax.nn.sigmoid(x2))
    assert out2.shape == x2.shape
    assert out2.dtype == x2.dtype
    assert jnp.allclose(out2, ref2, atol=1e-5, rtol=1e-5)

    print("KERNEL_OK")
</pallas_src>

<mosaic_0001>
module attributes {stable_mosaic.version = 11 : i64} {
  func.func @_adaptive_act_kernel(%arg0: i32, %arg1: memref<3xf32, #tpu.memory_space<smem>>, %arg2: memref<16x128xf32, #tpu.memory_space<vmem>>, %arg3: memref<16x128xf32, #tpu.memory_space<vmem>>) attributes {dimension_semantics = [#tpu.dimension_semantics<parallel>], iteration_bounds = array<i64: 1>, scalar_prefetch = 1 : i64, scratch_operands = 0 : i64, tpu.core_type = #tpu.core_type<tc>, window_params = [{transform_indices = @transform_0, window_bounds = array<i64: 16, 128>}, {transform_indices = @transform_1, window_bounds = array<i64: 16, 128>}]} {
    %c0 = arith.constant 0 : index
    %0 = memref.load %arg1[%c0] : memref<3xf32, #tpu.memory_space<smem>>
    %c1 = arith.constant 1 : index
    %1 = memref.load %arg1[%c1] : memref<3xf32, #tpu.memory_space<smem>>
    %c2 = arith.constant 2 : index
    %2 = memref.load %arg1[%c2] : memref<3xf32, #tpu.memory_space<smem>>
    %cst = arith.constant 5.000000e-01 : f32
    %3 = arith.mulf %cst, %2 : f32
    %c0_0 = arith.constant 0 : index
    %c0_1 = arith.constant 0 : index
    %4 = vector.load %arg2[%c0_0, %c0_1] : memref<16x128xf32, #tpu.memory_space<vmem>>, vector<16x128xf32>
    %cst_2 = arith.constant 0.000000e+00 : f32
    %5 = vector.broadcast %cst_2 : f32 to vector<16x128xf32>
    %6 = arith.maximumf %4, %5 : vector<16x128xf32>
    %7 = math.tanh %4 : vector<16x128xf32>
    %cst_3 = arith.constant 5.000000e-01 : f32
    %8 = vector.broadcast %cst_3 : f32 to vector<16x128xf32>
    %9 = arith.mulf %8, %4 : vector<16x128xf32>
    %10 = math.tanh %9 : vector<16x128xf32>
    %11 = vector.broadcast %0 : f32 to vector<16x128xf32>
    %12 = arith.mulf %11, %6 : vector<16x128xf32>
    %13 = vector.broadcast %1 : f32 to vector<16x128xf32>
    %14 = arith.mulf %13, %7 : vector<16x128xf32>
    %15 = arith.addf %12, %14 : vector<16x128xf32>
    %16 = vector.broadcast %3 : f32 to vector<16x128xf32>
    %17 = arith.mulf %16, %10 : vector<16x128xf32>
    %18 = arith.addf %15, %17 : vector<16x128xf32>
    %19 = vector.broadcast %3 : f32 to vector<16x128xf32>
    %20 = arith.addf %18, %19 : vector<16x128xf32>
    %c0_4 = arith.constant 0 : index
    %c0_5 = arith.constant 0 : index
    %21 = vector.load %arg3[%c0_4, %c0_5] : memref<16x128xf32, #tpu.memory_space<vmem>>, vector<16x128xf32>
    tpu.vector_store %arg3[%c0_4, %c0_5], %20 {strides = array<i32>} : memref<16x128xf32, #tpu.memory_space<vmem>>, vector<16x128xf32>,
    return
  }
  func.func @transform_0(%arg0: i32, %arg1: memref<3xf32, #tpu.memory_space<smem>>) -> (i32, i32) {
    %c0_i32 = arith.constant 0 : i32
    %c0_i32_0 = arith.constant 0 : i32
    return %arg0, %c0_i32 : i32, i32
  }
  func.func @transform_1(%arg0: i32, %arg1: memref<3xf32, #tpu.memory_space<smem>>) -> (i32, i32) {
    %c0_i32 = arith.constant 0 : i32
    %c0_i32_0 = arith.constant 0 : i32
    return %arg0, %c0_i32 : i32, i32
  }
}

</mosaic_0001>

<llo_original>
// kernel: tpu_custom_call.1
$region0: #{tpu_custom_call.1}
  #allocation0 [shape = 'u32[]', space=smem, size = 0x4, offset = 0x4, fixed_abs, tag = 'smem constant byte address 0x4 - core index']
  #allocation1 [shape = 'u32[144,128]{1,0:T(1,128)}', space=vmem, size = 0x12000, scoped, tag = 'internal scratch']
  #allocation2 [shape = 's32[1]{0}', space=sflag, size = 0x4, scoped, tag = 'scoped memory for tpu_custom_call.1']
  #allocation3 [shape = 'u8[512]{0}', space=smem, size = 0x200, scoped, tag = 'prefetched SMEM operand 0']
  %s0 = inlined_call_operand.hbm [shape: f32[3], index: 0, kind: input, shape index: {}]
  %s1 = inlined_call_operand.hbm [shape: f32[16,128], index: 1, kind: input, shape index: {}]
  %s2 = inlined_call_operand.hbm [shape: f32[16,128], index: 2, kind: output, shape index: {}]
  %s3 = sld [smem:[#allocation0]]
  $region18: #{tpu_custom_call.1} parent=0
    _
  %s5 = ssub.s32 1, %s3
  %s6 = scalar_select 0, %s5, %s3
  %8 = dma.hbm_to_smem %s0, 16, [#allocation3], [#allocation2]
  %9 = dma.done [#allocation2], 16
  %10 = sfence
  $region1: #{tpu_custom_call.1} parent=0
    #allocation4 [shape = 'u8[8192]{0}', space=vmem, size = 0x2000, scoped, tag = 'input window, operand 1, single buffered']
    #allocation5 [shape = 's32[1]{0}', space=sflag, size = 0x4, scoped, tag = 'scoped memory for tpu_custom_call.1']
    #allocation6 [shape = 's32[1]{0}', space=sflag, size = 0x4, scoped, tag = 'scoped memory for tpu_custom_call.1']
    #allocation7 [shape = 'u8[8192]{0}', space=vmem, size = 0x2000, scoped, tag = 'output window, operand 0, single buffered']
    %11 = vsyncpa [#allocation5], 0
    %12 = vsyncpa [#allocation6], 0
    // Predicated region
    $region2: #{tpu_custom_call.1} parent=1 // pred_check
      _
    $region3: #{tpu_custom_call.1} parent=1 // pred_check_branch
      %14 = sbr.rel (0) target = $region5
    $region4: #{tpu_custom_call.1} parent=1 // pred_region
      %s16 = ssub.s32 256, 256
      %17 = vsyncadd [#allocation5], %s16
      %s18 = sshll.u32 [#allocation4], 4
      %s19 = int_to_ptr.vmem [resolvable:$true] %s18
      %24 = dma.hbm_to_vmem [thread:$0]  %s1, 256, %s19, [#allocation5], 128, 128, 8
    $region5: #{tpu_custom_call.1} parent=1 // pred_fallthru
      _
    // Predicated region
    $region6: #{tpu_custom_call.1} parent=1 // pred_check
      _
    $region7: #{tpu_custom_call.1} parent=1 // pred_check_branch
      %26 = sbr.rel (0) target = $region9
    $region8: #{tpu_custom_call.1} parent=1 // pred_region
      %27 = dma.done [#allocation5], 256
    $region9: #{tpu_custom_call.1} parent=1 // pred_fallthru
      _
    %s28 = sld [smem:[#allocation3]]
    %s29 = sld [smem:[#allocation3 + $0x1]]
    %s30 = sld [smem:[#allocation3 + $0x2]]
    %s31 = smul.f32 %s30, 0.5
    %v32 = vld [vmem:[#allocation4] sm:$0xff]
    %v33 = vld [vmem:[#allocation4 + $0x8] sm:$0xff]
    %v34 = vmax.f32 %v32, 0.0
    %v35 = vmax.f32 %v33, 0.0
    %v36 = vtanh.pop %v32
    %v37 = vtanh.pop %v33
    %v38 = vmul.f32 %v32, 0.5
    %v39 = vmul.f32 %v33, 0.5
    %v40 = vtanh.pop %v38
    %v41 = vtanh.pop %v39
    %v42 = vstv %s28
    %v43 = vmul.f32 %v42, %v34
    %v44 = vmul.f32 %v42, %v35
    %v45 = vstv %s29
    %v46 = vmul.f32 %v45, %v36
    %v47 = vmul.f32 %v45, %v37
    %v48 = vadd.f32 %v43, %v46
    %v49 = vadd.f32 %v44, %v47
    %v50 = vstv %s31
    %v51 = vmul.f32 %v50, %v40
    %v52 = vmul.f32 %v50, %v41
    %v53 = vadd.f32 %v48, %v51
    %v54 = vadd.f32 %v49, %v52
    %v55 = vadd.f32 %v53, %v50
    %v56 = vadd.f32 %v54, %v50
    %57 = vst [vmem:[#allocation7] sm:$0xff] %v55
    %58 = vst [vmem:[#allocation7 + $0x8] sm:$0xff] %v56
    // Predicated region
    $region10: #{tpu_custom_call.1} parent=1 // pred_check
      _
    $region11: #{tpu_custom_call.1} parent=1 // pred_check_branch
      %60 = sbr.rel (0) target = $region13
    $region12: #{tpu_custom_call.1} parent=1 // pred_region
      %s62 = ssub.s32 256, 256
      %63 = vsyncadd [#allocation6], %s62
      %s64 = sshll.u32 [#allocation7], 4
      %s65 = int_to_ptr.vmem [resolvable:$true] %s64
      %70 = dma.vmem_to_hbm [thread:$0]  %s65, 256, %s2, [#allocation6], 128, 128, 8
    $region13: #{tpu_custom_call.1} parent=1 // pred_fallthru
      _
    // Predicated region
    $region14: #{tpu_custom_call.1} parent=1 // pred_check
      _
    $region15: #{tpu_custom_call.1} parent=1 // pred_check_branch
      %72 = sbr.rel (0) target = $region17
    $region16: #{tpu_custom_call.1} parent=1 // pred_region
      %73 = dma.done [#allocation6], 256
    $region17: #{tpu_custom_call.1} parent=1 // pred_fallthru
      _
    %74 = vsyncpa [#allocation5], 1
    %75 = vsyncpa [#allocation6], 1

</llo_original>
